<compile_context>
chip_gen: v7x
topology: tpu7x:2x2x1
jax: 0.10.0
libtpu: 0.0.40
codegen_flags: <defaults>
</compile_context>

<pallas_src>
import functools
import math

import jax
import jax.numpy as jnp
from jax import lax
from jax.experimental import pallas as pl
from jax.experimental.pallas import tpu as pltpu


def _round_up(x, m):
    return ((x + m - 1) // m) * m


def _embedding_gather_kernel(ids_ref, tab_hbm, o_ref, row_buf, sems, *,
                             scale, num_tokens, vocab_size, block_tokens,
                             inflight):
    """Manual HBM row-gather for one (block_tokens, d_model) output block.

    ids_ref : (num_tokens,) int32 in SMEM (scalar prefetch)
    tab_hbm : (vocab_size, d_model) ref left in HBM (memory_space=pl.ANY)
    o_ref   : (block_tokens, d_model) VMEM output block
    row_buf : (block_tokens, d_model) VMEM staging buffer (DMA destination)
    sems    : (inflight,) DMA semaphores (sliding window)
    """
    i = pl.program_id(0)
    base = i * block_tokens

    def token_id(r):
        # Clamp the ragged tail to the last real token and clamp the id to a
        # valid table row so every DMA source is in-bounds.
        g = jnp.minimum(base + r, num_tokens - 1)
        tok = ids_ref[g]
        return jnp.clip(tok, 0, vocab_size - 1)

    def start(r, tok):
        pltpu.make_async_copy(
            tab_hbm.at[pl.ds(tok, 1), :],
            row_buf.at[pl.ds(r, 1), :],
            sems.at[lax.rem(r, inflight)],
        ).start()

    def wait(r):
        # Descriptor only needs the right transfer size; every row is identical.
        pltpu.make_async_copy(
            tab_hbm.at[pl.ds(0, 1), :],
            row_buf.at[pl.ds(0, 1), :],
            sems.at[lax.rem(r, inflight)],
        ).wait()

    # Prime up to `inflight` row DMAs.
    @pl.loop(0, min(inflight, block_tokens))
    def _(r):
        start(r, token_id(r))

    # Sliding window: retire row r, launch row r + inflight.
    @pl.loop(0, block_tokens)
    def _(r):
        nxt = r + inflight
        tok_next = token_id(nxt)          # SMEM read before the DMA wait
        wait(r)

        @pl.when(nxt < block_tokens)
        def _():
            start(nxt, tok_next)

    # All rows have landed; one lane-dense pass applies the sqrt(d_model) scale.
    o_ref[...] = (row_buf[...].astype(jnp.float32) *
                  jnp.float32(scale)).astype(o_ref.dtype)


def input_embedding(ids, table, *, block_tokens=512, inflight=8,
                    vmem_limit_bytes=None):
    """InputEmbedding forward: table[ids] * sqrt(d_model).

    ids:   integer array of token ids, any leading shape (e.g. (batch, seq)).
    table: (vocab_size, d_model) embedding weights (stays in HBM).
    """
    orig_shape = ids.shape
    vocab_size, d_model = table.shape

    num_tokens = 1
    for d in orig_shape:
        num_tokens *= d
    ids_flat = ids.reshape(num_tokens).astype(jnp.int32)

    # Rows per grid step: multiple of 8 (sublane), clamped so tiny inputs
    # still satisfy the block-shape constraint. No wrapper-side padding; the
    # ragged last block is handled by clamping inside the kernel.
    block_tokens = max(8, min(block_tokens, _round_up(num_tokens, 8)))
    grid = (pl.cdiv(num_tokens, block_tokens),)

    scale = math.sqrt(float(d_model))
    dsize = jnp.dtype(table.dtype).itemsize
    cost = pl.CostEstimate(
        flops=0,
        transcendentals=0,
        bytes_accessed=2 * num_tokens * d_model * dsize + num_tokens * 4,
    )

    kernel = pl.pallas_call(
        functools.partial(
            _embedding_gather_kernel,
            scale=scale,
            num_tokens=num_tokens,
            vocab_size=vocab_size,
            block_tokens=block_tokens,
            inflight=inflight,
        ),
        out_shape=jax.ShapeDtypeStruct((num_tokens, d_model), table.dtype),
        grid_spec=pltpu.PrefetchScalarGridSpec(
            num_scalar_prefetch=1,                      # ids -> SMEM
            grid=grid,
            in_specs=[pl.BlockSpec(memory_space=pl.ANY)],   # table stays in HBM
            out_specs=pl.BlockSpec((block_tokens, d_model),
                                   lambda i, ids: (i, 0)),
            scratch_shapes=[
                pltpu.VMEM((block_tokens, d_model), table.dtype),
                pltpu.SemaphoreType.DMA((inflight,)),
            ],
        ),
        compiler_params=pltpu.CompilerParams(
            dimension_semantics=("parallel",),
            vmem_limit_bytes=vmem_limit_bytes,
        ),
        cost_estimate=cost,
    )
    out = kernel(ids_flat, table)
    return out.reshape(*orig_shape, d_model)


if __name__ == "__main__":
    key = jax.random.PRNGKey(0)
    batch, seq = 2, 8
    d_model, vocab_size = 128, 512   # d_model multiple of 128 -> lane-dense

    k_ids, k_emb = jax.random.split(key)
    ids = jax.random.randint(k_ids, (batch, seq), 0, vocab_size, dtype=jnp.int32)
    # nn.Embedding default init is N(0, 1)
    table = jax.random.normal(k_emb, (vocab_size, d_model), dtype=jnp.float32)

    # block_tokens=8 so the tiny demo still exercises a multi-step parallel grid.
    out = input_embedding(ids, table, block_tokens=8, inflight=4)
    out = jax.block_until_ready(out)

    # Reference in plain JAX.
    ref = table[ids] * jnp.float32(math.sqrt(float(d_model)))
    assert out.shape == (batch, seq, d_model)
    assert jnp.allclose(out, ref, atol=1e-5, rtol=1e-5)

    print("KERNEL_OK")
</pallas_src>

<mosaic_0001>
module attributes {stable_mosaic.version = 11 : i64} {
  func.func @_embedding_gather_kernel(%arg0: i32, %arg1: memref<16xi32, #tpu.memory_space<smem>>, %arg2: memref<512x128xf32, #tpu.memory_space<any>>, %arg3: memref<8x128xf32, #tpu.memory_space<vmem>>, %arg4: memref<8x128xf32, #tpu.memory_space<vmem>>, %arg5: memref<4x!tpu.dma_semaphore, #tpu.memory_space<semaphore_mem>>) attributes {dimension_semantics = [#tpu.dimension_semantics<parallel>], iteration_bounds = array<i64: 2>, scalar_prefetch = 1 : i64, scratch_operands = 2 : i64, tpu.core_type = #tpu.core_type<tc>, window_params = [{}, {transform_indices = @transform_1, window_bounds = array<i64: 8, 128>}]} {
    %c8_i32 = arith.constant 8 : i32
    %0 = arith.muli %arg0, %c8_i32 : i32
    %c0_i32 = arith.constant 0 : i32
    %c4_i32 = arith.constant 4 : i32
    %1 = arith.addi %c0_i32, %c4_i32 : i32
    %c1_i32 = arith.constant 1 : i32
    scf.for %arg6 = %c0_i32 to %1 step %c1_i32  : i32 {
      %c1_i32_8 = arith.constant 1 : i32
      %7 = arith.muli %arg6, %c1_i32_8 : i32
      %c0_i32_9 = arith.constant 0 : i32
      %8 = arith.addi %c0_i32_9, %7 : i32
      %9 = arith.addi %0, %8 : i32
      %c15_i32 = arith.constant 15 : i32
      %10 = arith.minsi %9, %c15_i32 : i32
      %11 = arith.index_cast %10 : i32 to index
      %12 = memref.load %arg1[%11] : memref<16xi32, #tpu.memory_space<smem>>
      %c0_i32_10 = arith.constant 0 : i32
      %c511_i32 = arith.constant 511 : i32
      %13 = arith.maxsi %c0_i32_10, %12 : i32
      %14 = arith.minsi %c511_i32, %13 : i32
      %c4_i32_11 = arith.constant 4 : i32
      %15 = arith.remsi %8, %c4_i32_11 : i32
      %c0_i32_12 = arith.constant 0 : i32
      %16 = tpu.memref_slice %arg2[%14, %c0_i32_12] : memref<512x128xf32, #tpu.memory_space<any>> -> memref<1x128xf32, #tpu.memory_space<any>>
      %c0_i32_13 = arith.constant 0 : i32
      %17 = tpu.memref_slice %arg4[%8, %c0_i32_13] : memref<8x128xf32, #tpu.memory_space<vmem>> -> memref<1x128xf32, #tpu.memory_space<vmem>>
      %18 = tpu.memref_slice %arg5[%15] : memref<4x!tpu.dma_semaphore, #tpu.memory_space<semaphore_mem>> -> memref<1x!tpu.dma_semaphore, #tpu.memory_space<semaphore_mem>>
      %19 = tpu.memref_squeeze %18 : memref<1x!tpu.dma_semaphore, #tpu.memory_space<semaphore_mem>> -> memref<!tpu.dma_semaphore, #tpu.memory_space<semaphore_mem>>
      tpu.enqueue_dma source(%16 : memref<1x128xf32, #tpu.memory_space<any>>) target(%17 : memref<1x128xf32, #tpu.memory_space<vmem>>) target_semaphore(%19 : memref<!tpu.dma_semaphore, #tpu.memory_space<semaphore_mem>>)
    }
    %c4_i32_0 = arith.constant 4 : i32
    %c0_i32_1 = arith.constant 0 : i32
    %c8_i32_2 = arith.constant 8 : i32
    %2 = arith.addi %c0_i32_1, %c8_i32_2 : i32
    %c1_i32_3 = arith.constant 1 : i32
    scf.for %arg6 = %c0_i32_1 to %2 step %c1_i32_3  : i32 {
      %c1_i32_8 = arith.constant 1 : i32
      %7 = arith.muli %arg6, %c1_i32_8 : i32
      %c0_i32_9 = arith.constant 0 : i32
      %8 = arith.addi %c0_i32_9, %7 : i32
      %c4_i32_10 = arith.constant 4 : i32
      %9 = arith.addi %8, %c4_i32_10 : i32
      %10 = arith.addi %0, %9 : i32
      %c15_i32 = arith.constant 15 : i32
      %11 = arith.minsi %10, %c15_i32 : i32
      %12 = arith.index_cast %11 : i32 to index
      %13 = memref.load %arg1[%12] : memref<16xi32, #tpu.memory_space<smem>>
      %c0_i32_11 = arith.constant 0 : i32
      %c511_i32 = arith.constant 511 : i32
      %14 = arith.maxsi %c0_i32_11, %13 : i32
      %15 = arith.minsi %c511_i32, %14 : i32
      %c4_i32_12 = arith.constant 4 : i32
      %16 = arith.remsi %8, %c4_i32_12 : i32
      %c0_i32_13 = arith.constant 0 : i32
      %c0_i32_14 = arith.constant 0 : i32
      %17 = tpu.memref_slice %arg2[%c0_i32_13, %c0_i32_14] : memref<512x128xf32, #tpu.memory_space<any>> -> memref<1x128xf32, #tpu.memory_space<any>>
      %c0_i32_15 = arith.constant 0 : i32
      %c0_i32_16 = arith.constant 0 : i32
      %18 = tpu.memref_slice %arg4[%c0_i32_15, %c0_i32_16] : memref<8x128xf32, #tpu.memory_space<vmem>> -> memref<1x128xf32, #tpu.memory_space<vmem>>
      %19 = tpu.memref_slice %arg5[%16] : memref<4x!tpu.dma_semaphore, #tpu.memory_space<semaphore_mem>> -> memref<1x!tpu.dma_semaphore, #tpu.memory_space<semaphore_mem>>
      %20 = tpu.memref_squeeze %19 : memref<1x!tpu.dma_semaphore, #tpu.memory_space<semaphore_mem>> -> memref<!tpu.dma_semaphore, #tpu.memory_space<semaphore_mem>>
      tpu.wait_dma2 semaphore(%20 : memref<!tpu.dma_semaphore, #tpu.memory_space<semaphore_mem>>) src(%17 : memref<1x128xf32, #tpu.memory_space<any>>) dst(%18 : memref<1x128xf32, #tpu.memory_space<vmem>>)
      %c8_i32_17 = arith.constant 8 : i32
      %21 = arith.cmpi slt, %9, %c8_i32_17 : i32
      %22 = arith.extui %21 : i1 to i32
      %c0_i32_18 = arith.constant 0 : i32
      %23 = arith.cmpi ne, %22, %c0_i32_18 : i32
      scf.if %23 {
        %c4_i32_19 = arith.constant 4 : i32
        %24 = arith.remsi %9, %c4_i32_19 : i32
        %c0_i32_20 = arith.constant 0 : i32
        %25 = tpu.memref_slice %arg2[%15, %c0_i32_20] : memref<512x128xf32, #tpu.memory_space<any>> -> memref<1x128xf32, #tpu.memory_space<any>>
        %c0_i32_21 = arith.constant 0 : i32
        %26 = tpu.memref_slice %arg4[%9, %c0_i32_21] : memref<8x128xf32, #tpu.memory_space<vmem>> -> memref<1x128xf32, #tpu.memory_space<vmem>>
        %27 = tpu.memref_slice %arg5[%24] : memref<4x!tpu.dma_semaphore, #tpu.memory_space<semaphore_mem>> -> memref<1x!tpu.dma_semaphore, #tpu.memory_space<semaphore_mem>>
        %28 = tpu.memref_squeeze %27 : memref<1x!tpu.dma_semaphore, #tpu.memory_space<semaphore_mem>> -> memref<!tpu.dma_semaphore, #tpu.memory_space<semaphore_mem>>
        tpu.enqueue_dma source(%25 : memref<1x128xf32, #tpu.memory_space<any>>) target(%26 : memref<1x128xf32, #tpu.memory_space<vmem>>) target_semaphore(%28 : memref<!tpu.dma_semaphore, #tpu.memory_space<semaphore_mem>>)
      } else {
      }
    }
    %c8_i32_4 = arith.constant 8 : i32
    %c0 = arith.constant 0 : index
    %c0_5 = arith.constant 0 : index
    %3 = vector.load %arg4[%c0, %c0_5] : memref<8x128xf32, #tpu.memory_space<vmem>>, vector<8x128xf32>
    %cst = arith.constant 11.3137083 : f32
    %4 = vector.broadcast %cst : f32 to vector<8x128xf32>
    %5 = arith.mulf %3, %4 : vector<8x128xf32>
    %c0_6 = arith.constant 0 : index
    %c0_7 = arith.constant 0 : index
    %6 = vector.load %arg3[%c0_6, %c0_7] : memref<8x128xf32, #tpu.memory_space<vmem>>, vector<8x128xf32>
    tpu.vector_store %arg3[%c0_6, %c0_7], %5 {strides = array<i32>} : memref<8x128xf32, #tpu.memory_space<vmem>>, vector<8x128xf32>,
    return
  }
  func.func @transform_1(%arg0: i32, %arg1: memref<16xi32, #tpu.memory_space<smem>>) -> (i32, i32) {
    %c0_i32 = arith.constant 0 : i32
    %c0_i32_0 = arith.constant 0 : i32
    return %arg0, %c0_i32 : i32, i32
  }
}

</mosaic_0001>

<llo_original>
// kernel: tpu_custom_call.1
$region0: #{tpu_custom_call.1}
  #allocation0 [shape = 'u32[]', space=smem, size = 0x4, offset = 0x4, fixed_abs, tag = 'smem constant byte address 0x4 - core index']
  #allocation1 [shape = 'u32[144,128]{1,0:T(1,128)}', space=vmem, size = 0x12000, scoped, tag = 'internal scratch']
  #allocation2 [shape = 'f32[8,128]{1,0:T(8,128)}', space=vmem, size = 0x1000, scoped, tag = 'scratch operand']
  #allocation3 [shape = 's32[4]{0}', space=sflag, size = 0x10, scoped, tag = 'scratch operand']
  #allocation4 [shape = 's32[1]{0}', space=sflag, size = 0x4, scoped, tag = 'scoped memory for tpu_custom_call.1']
  #allocation5 [shape = 'u8[512]{0}', space=smem, size = 0x200, scoped, tag = 'prefetched SMEM operand 0']
  #allocation8 [shape = 's32[]', space=sflag, size = 0x4, offset = 0, fixed_abs, tag = 'sflag constant byte address 0x0 - dummy sync flag']
  #allocation9 [shape = 's32[]', space=sflag, size = 0x4, offset = 0, fixed_abs, tag = 'sflag constant byte address 0x0 - dummy sync flag']
  #allocation10 [shape = 'u32[]', space=smem, size = 0x4, offset = 0x44, fixed_abs, tag = 'smem constant byte address 0x44 - assertion arg 0']
  #allocation11 [shape = 'u32[]', space=smem, size = 0x4, offset = 0x48, fixed_abs, tag = 'smem constant byte address 0x48 - assertion arg 1']
  #allocation12 [shape = 's32[]', space=sflag, size = 0x4, offset = 0, fixed_abs, tag = 'sflag constant byte address 0x0 - dummy sync flag']
  #allocation13 [shape = 's32[]', space=sflag, size = 0x4, offset = 0, fixed_abs, tag = 'sflag constant byte address 0x0 - dummy sync flag']
  %s0 = inlined_call_operand.hbm [shape: s32[16], index: 0, kind: input, shape index: {}]
  %s1 = inlined_call_operand.hbm [shape: f32[512,128], index: 1, kind: input, shape index: {}]
  %s2 = inlined_call_operand.hbm [shape: f32[16,128], index: 2, kind: output, shape index: {}]
  %s3 = sld [smem:[#allocation0]]
  $region51: #{tpu_custom_call.1} parent=0
    _
  %s5 = ssub.s32 1, %s3
  %s6 = scalar_select 0, %s5, %s3
  %8 = dma.hbm_to_smem %s0, 16, [#allocation5], [#allocation4]
  %9 = dma.done [#allocation4], 16
  %10 = sfence
  $region1: #{tpu_custom_call.1} parent=0
    #allocation6 [shape = 'u8[8192]{0}', space=vmem, size = 0x2000, scoped, tag = 'output window, operand 0']
    #allocation7 [shape = 's32[2]{0}', space=sflag, size = 0x8, scoped, tag = 'scoped memory for tpu_custom_call.1']
    %11 = vsyncpa [#allocation7], 0
    %s12 = scalar_lea.sflag [#allocation7], 1
    %13 = vsyncpa %s12, 0
    loop: start=0, step=1, limit=3
    $region2: #{tpu_custom_call.1} parent=1 // loop_pre_header
      _
    $region3: #{tpu_custom_call.1} parent=1 // loop_header
      %s15 = sphi 0, %s19
      %p16 = scmp.ge.s32.totalorder %s15, 3
      %s24 = sphi 0, %s26
      %s27 = sphi 0, %s24
      %s37 = sphi 0, %s27
    $region4: #{tpu_custom_call.1} parent=1 // loop_header_branch
      %18 = sbr.rel (%p16) target = $region8
    $region5: #{tpu_custom_call.1} parent=1 // loop_body
      %s20 = ssub.s32 %s15, 1
      %s21 = sadd.s32 %s15, 1
      %s22 = ssub.s32 %s15, %s21
      %p23 = scmp.eq.s32.totalorder %s22, 0
      %s25 = sadd.s32 %s24, 1
      %s26 = scalar_select %p23, %s24, %s25
      %p28 = pneg %p23
      %p29 = scmp.eq.s32.totalorder %s15, 1
      %p30 = por %p28, %p29
      %p31 = scmp.ne.s32.totalorder %s24, %s27
      %p32 = scmp.eq.s32.totalorder %s15, 0
      %p33 = por %p31, %p32
      %p34 = scmp.ne.s32.totalorder %s24, %s27
      %p35 = scmp.eq.s32.totalorder %s20, 1
      %p36 = por %p34, %p35
      %p38 = scmp.ne.s32.totalorder %s27, %s37
      %p39 = scmp.eq.s32.totalorder %s20, 0
      %p40 = por %p38, %p39
      %p41 = scmp.lt.s32.totalorder %s15, 2
      // Predicated region
      $region9: #{tpu_custom_call.1} parent=5 // pred_check
        %p42 = pneg %p41
      $region10: #{tpu_custom_call.1} parent=5 // pred_check_branch
        %44 = sbr.rel (%p42) target = $region12
      $region11: #{tpu_custom_call.1} parent=5 // pred_region
        %p45 = pneg %p33
        %p46 = pneg %p30
        %s47 = sand.u32 %s24, 1
        %s48 = scalar_lea.sflag [#allocation7], %s47
        %s49 = sand.u32 %s24, 1
        %s50 = smul.addr %s49, 8
        %s51 = scalar_lea.vmem [#allocation6], %s50
        %s52 = smul.u32 %s15, 8
        loop: start=0, step=1, limit=4
        $region13: #{tpu_custom_call.1} parent=11 // loop_pre_header
          _
        $region14: #{tpu_custom_call.1} parent=11 // loop_header
          %s54 = sphi 0, %s58
          %p55 = scmp.ge.s32.totalorder %s54, 4
        $region15: #{tpu_custom_call.1} parent=11 // loop_header_branch
          %57 = sbr.rel (%p55) target = $region19
        $region16: #{tpu_custom_call.1} parent=11 // loop_body
          %s59 = sadd.s32 %s52, %s54
          %p60 = scmp.lt.s32.totalorder %s59, 15
          %s61 = scalar_select %p60, %s59, 15
          %s62 = sld [smem:[#allocation5 + %s61]]
          %p63 = scmp.gt.s32.totalorder %s62, 0
          %s64 = scalar_select %p63, %s62, 0
          %p65 = scmp.lt.s32.totalorder %s64, 511
          %s66 = scalar_select %p65, %s64, 511
          %p67 = scmp.lt.s32.totalorder %s54, 0
          %s68 = ssub.s32 0, %s54
          %s69 = scalar_select %p67, %s68, %s54
          %s70 = sand.u32 %s69, 3
          %s71 = ssub.s32 0, %s70
          %s72 = scalar_select %p67, %s71, %s70
          %s73 = smul.addr %s66, 16
          %s74 = scalar_lea.hbm %s1, %s73
          %s75 = scalar_lea.vmem [#allocation2], %s54
          %s76 = scalar_lea.sflag [#allocation3], %s72
          // Predicated region
          $region20: #{tpu_custom_call.1} parent=16 // pred_check
            _
          $region21: #{tpu_custom_call.1} parent=16 // pred_check_branch
            %78 = sbr.rel target = $region23
          $region22: #{tpu_custom_call.1} parent=16 // pred_region
            %79 = sst [smem:[#allocation10]] [#allocation9]
            %80 = sst [smem:[#allocation11]] [#allocation8]
          $region23: #{tpu_custom_call.1} parent=16 // pred_fallthru
            _
          %82 = shalt.err (0)
          %s84 = sshll.u32 %s75, 4
          %s85 = int_to_ptr.vmem [resolvable:$true] %s84
          %87 = dma.hbm_to_vmem [thread:$0]  %s74, 16, %s85, %s76
        $region17: #{tpu_custom_call.1} parent=11 // loop_footer
          %s58 = sadd.s32 1, %s54
        $region18: #{tpu_custom_call.1} parent=11 // loop_footer_branch
          %53 = sbr.rel target = $region14
        $region19: #{tpu_custom_call.1} parent=11 // loop_exit
          _
        loop: start=0, step=1, limit=8
        $region24: #{tpu_custom_call.1} parent=11 // loop_pre_header
          _
        $region25: #{tpu_custom_call.1} parent=11 // loop_header
          %s89 = sphi 0, %s93
          %p90 = scmp.ge.s32.totalorder %s89, 8
        $region26: #{tpu_custom_call.1} parent=11 // loop_header_branch
          %92 = sbr.rel (%p90) target = $region30
        $region27: #{tpu_custom_call.1} parent=11 // loop_body
          %s94 = sadd.s32 %s89, 4
          %s95 = sadd.s32 %s52, %s94
          %p96 = scmp.lt.s32.totalorder %s95, 15
          %s97 = scalar_select %p96, %s95, 15
          %s98 = sld [smem:[#allocation5 + %s97]]
          %p99 = scmp.gt.s32.totalorder %s98, 0
          %s100 = scalar_select %p99, %s98, 0
          %p101 = scmp.lt.s32.totalorder %s100, 511
          %s102 = scalar_select %p101, %s100, 511
          %p103 = scmp.lt.s32.totalorder %s89, 0
          %s104 = ssub.s32 0, %s89
          %s105 = scalar_select %p103, %s104, %s89
          %s106 = sand.u32 %s105, 3
          %s107 = ssub.s32 0, %s106
          %s108 = scalar_select %p103, %s107, %s106
          %s109 = scalar_lea.sflag [#allocation3], %s108
          %s110 = smul.u32 1, 1
          %s111 = sshll.u32 %s110, 4
          %112 = dma.done %s109, %s111
          %p113 = scmp.lt.s32.totalorder %s94, 8
          // Predicated region
          $region31: #{tpu_custom_call.1} parent=27 // pred_check
            %p114 = pneg %p113
          $region32: #{tpu_custom_call.1} parent=27 // pred_check_branch
            %116 = sbr.rel (%p114) target = $region34
          $region33: #{tpu_custom_call.1} parent=27 // pred_region
            %p117 = scmp.lt.s32.totalorder %s94, 0
            %s118 = ssub.s32 0, %s94
            %s119 = scalar_select %p117, %s118, %s94
            %s120 = sand.u32 %s119, 3
            %s121 = ssub.s32 0, %s120
            %s122 = scalar_select %p117, %s121, %s120
            %s123 = smul.addr %s102, 16
            %s124 = scalar_lea.hbm %s1, %s123
            %s125 = scalar_lea.vmem [#allocation2], %s94
            %s126 = scalar_lea.sflag [#allocation3], %s122
            // Predicated region
            $region35: #{tpu_custom_call.1} parent=33 // pred_check
              _
            $region36: #{tpu_custom_call.1} parent=33 // pred_check_branch
              %128 = sbr.rel target = $region38
            $region37: #{tpu_custom_call.1} parent=33 // pred_region
              %129 = sst [smem:[#allocation10]] [#allocation13]
              %130 = sst [smem:[#allocation11]] [#allocation12]
            $region38: #{tpu_custom_call.1} parent=33 // pred_fallthru
              _
            %132 = shalt.err (0)
            %s134 = sshll.u32 %s125, 4
            %s135 = int_to_ptr.vmem [resolvable:$true] %s134
            %137 = dma.hbm_to_vmem [thread:$0]  %s124, 16, %s135, %s126
          $region34: #{tpu_custom_call.1} parent=27 // pred_fallthru
            _
        $region28: #{tpu_custom_call.1} parent=11 // loop_footer
          %s93 = sadd.s32 1, %s89
        $region29: #{tpu_custom_call.1} parent=11 // loop_footer_branch
          %88 = sbr.rel target = $region25
        $region30: #{tpu_custom_call.1} parent=11 // loop_exit
          _
        %v138 = vld [vmem:[#allocation2] sm:$0xff]
        %v139 = vmul.f32 %v138, 11.313708
        %140 = vst [vmem:[%s51] sm:$0xff] %v139
        %s141 = sand.u32 %s24, 1
        %s142 = scalar_lea.sflag [#allocation7], %s141
        %s143 = sand.u32 %s24, 1
        %s144 = smul.addr %s143, 8
        %s145 = scalar_lea.vmem [#allocation6], %s144
        // Predicated region
        $region39: #{tpu_custom_call.1} parent=11 // pred_check
          %p146 = pneg %p30
        $region40: #{tpu_custom_call.1} parent=11 // pred_check_branch
          %148 = sbr.rel (%p146) target = $region42
        $region41: #{tpu_custom_call.1} parent=11 // pred_region
          %s150 = ssub.s32 128, 128
          %151 = vsyncadd %s142, %s150
          %s152 = smul.addr %s15, 128
          %s153 = scalar_lea.hbm %s2, %s152
          %s155 = sshll.u32 %s145, 4
          %s156 = int_to_ptr.vmem [resolvable:$true] %s155
          %158 = dma.vmem_to_hbm [thread:$0]  %s156, 128, %s153, %s142
        $region42: #{tpu_custom_call.1} parent=11 // pred_fallthru
          _
      $region12: #{tpu_custom_call.1} parent=5 // pred_fallthru
        _
      %p159 = scmp.le.s32.totalorder 1, %s15
      // Predicated region
      $region43: #{tpu_custom_call.1} parent=5 // pred_check
        %p160 = pneg %p159
      $region44: #{tpu_custom_call.1} parent=5 // pred_check_branch
        %162 = sbr.rel (%p160) target = $region46
      $region45: #{tpu_custom_call.1} parent=5 // pred_region
        %s163 = ssub.s32 %s15, 1
        // Predicated region
        $region47: #{tpu_custom_call.1} parent=45 // pred_check
          %p164 = pneg %p36
        $region48: #{tpu_custom_call.1} parent=45 // pred_check_branch
          %166 = sbr.rel (%p164) target = $region50
        $region49: #{tpu_custom_call.1} parent=45 // pred_region
          %s167 = sand.u32 %s27, 1
          %s168 = scalar_lea.sflag [#allocation7], %s167
          %s169 = sand.u32 %s27, 1
          %s170 = smul.addr %s169, 8
          %s171 = scalar_lea.vmem [#allocation6], %s170
          %172 = dma.done %s168, 128
        $region50: #{tpu_custom_call.1} parent=45 // pred_fallthru
          _
      $region46: #{tpu_custom_call.1} parent=5 // pred_fallthru
        _
    $region6: #{tpu_custom_call.1} parent=1 // loop_footer
      %s19 = sadd.s32 1, %s15
    $region7: #{tpu_custom_call.1} parent=1 // loop_footer_branch
      %14 = sbr.rel target = $region3
    $region8: #{tpu_custom_call.1} parent=1 // loop_exit
      _
    %173 = vsyncpa [#allocation7], 1
    %s174 = scalar_lea.sflag [#allocation7], 1
    %175 = vsyncpa %s174, 1
  %176 = vsyncmov [#allocation3]
  %s177 = vpop.sfrf %176
  %p178 = scmp.eq.s32.totalorder %s177, 0
  %p179 = pneg %p178
  %181 = shalt.err (%p179)
  %s182 = scalar_lea.sflag [#allocation3], 1
  %183 = vsyncmov %s182
  %s184 = vpop.sfrf %183
  %p185 = scmp.eq.s32.totalorder %s184, 0
  %p186 = pneg %p185
  %188 = shalt.err (%p186)
  %s189 = scalar_lea.sflag [#allocation3], 2
  %190 = vsyncmov %s189
  %s191 = vpop.sfrf %190
  %p192 = scmp.eq.s32.totalorder %s191, 0
  %p193 = pneg %p192
  %195 = shalt.err (%p193)
  %s196 = scalar_lea.sflag [#allocation3], 3
  %197 = vsyncmov %s196
  %s198 = vpop.sfrf %197
  %p199 = scmp.eq.s32.totalorder %s198, 0
  %p200 = pneg %p199
  %202 = shalt.err (%p200)

</llo_original>
